<compile_context>
chip_gen: v7x
topology: tpu7x:2x2x1
jax: 0.10.0
libtpu: 0.0.40
codegen_flags: <defaults>
</compile_context>

<pallas_src>
import functools

import numpy as np

import jax
import jax.numpy as jnp
from jax import lax
from jax.experimental import pallas as pl
from jax.experimental.pallas import tpu as pltpu


def _selfsup_partial_kernel(x_ref, t_ref, w_ref, b_ref, acc_ref, *, n_rows, tile_m):
    """One (tile_m, F) row-chunk of the gathered + time-shifted, flattened data.

    x_ref  : (tile_m, F_in)   y_hat rows (compute dtype, e.g. bf16)
    t_ref  : (tile_m, F_out)  binary targets
    w_ref  : (F_in, F_out)    resident Linear weight (pre-transposed)
    b_ref  : (1, F_out)       resident bias
    acc_ref: (8, 128)         resident lane-dense accumulator; lanes 0/1/2 hold
             A = sum(y*softplus(-logits)), B = sum((1-y)*softplus(logits)), sum(y).
    """
    step = pl.program_id(0)

    @pl.when(step == 0)
    def _():
        acc_ref[...] = jnp.zeros_like(acc_ref)

    # Linear layer on the MXU with f32 accumulation.
    logits = jnp.dot(x_ref[...], w_ref[...], preferred_element_type=jnp.float32)
    logits = logits + b_ref[...].astype(jnp.float32)

    # Single EUP softplus pass; derive the other via softplus(x) = softplus(-x) + x.
    sp_neg = jax.nn.softplus(-logits)                 # -log sigmoid(x)
    sp_pos = sp_neg + logits                          # -log(1 - sigmoid(x))

    t = t_ref[...].astype(jnp.float32)

    # Mask padded tail rows (global row index >= n_rows) so padding contributes 0.
    row = lax.broadcasted_iota(jnp.int32, logits.shape, 0) + step * tile_m
    valid = (row < n_rows).astype(jnp.float32)
    t_v = t * valid
    omt_v = (1.0 - t) * valid

    p_a = jnp.sum(t_v * sp_neg)                       # A
    p_b = jnp.sum(omt_v * sp_pos)                     # B
    p_y = jnp.sum(t_v)                                # sum(y)

    # Pack the three scalars into a full (8,128) vreg -> unmasked VMEM store;
    # the HBM writeback happens only once (resident output block).
    lane = lax.broadcasted_iota(jnp.int32, acc_ref.shape, 1)
    packed = jnp.where(lane == 0, p_a,
                       jnp.where(lane == 1, p_b,
                                 jnp.where(lane == 2, p_y, 0.0)))
    acc_ref[...] += packed


def _round_up(x, m):
    return (x + m - 1) // m * m


def self_supervise_loss(y_hat, y, w, b, idxs, *,
                        compute_dtype=jnp.bfloat16, tile_m=512):
    """Pallas implementation of SelfSupervise.forward (binary=True).

    w is the Linear weight pre-transposed to (in_features, out_features);
    b is (out_features,).  idxs plays the role of torch.randint(...) inside the
    module's forward (passed in deterministically).
    """
    yh_f = y_hat.reshape((-1,) + y_hat.shape[-2:])    # (Nf, T, F_in)   flatten(0,-3)
    y_f = y.reshape((-1,) + y.shape[-2:])             # (Nf, T, F_out)
    _, t_len, f_in = yh_f.shape
    f_out = y_f.shape[-1]
    s = idxs.shape[0]
    idxs = idxs.astype(jnp.int32)

    # Gather + time shift in the wrapper: keeps every kernel read tile-aligned
    # (no sublane-1 slice inside the kernel) and lets the kernel batch all
    # selected samples into large row tiles.
    yh_sel = jnp.take(yh_f, idxs, axis=0)[:, : t_len - 1, :]   # (S, T-1, F_in)
    y_sel = jnp.take(y_f, idxs, axis=0)[:, 1:, :]              # (S, T-1, F_out)

    m = s * (t_len - 1)                               # total flattened rows
    x2 = yh_sel.reshape(m, f_in).astype(compute_dtype)
    t2 = y_sel.reshape(m, f_out).astype(compute_dtype)  # 0/1 exact in bf16
    w2 = w.astype(compute_dtype)
    b2 = b.reshape(1, f_out).astype(jnp.float32)

    # Row tiling: one big (tm, F_in) x (F_in, F_out) matmul per grid step.
    tm = min(tile_m, _round_up(m, 8))                 # multiple of 8 sublanes
    grid = pl.cdiv(m, tm)
    m_pad = grid * tm
    if m_pad != m:
        x2 = jnp.pad(x2, ((0, m_pad - m), (0, 0)))
        t2 = jnp.pad(t2, ((0, m_pad - m), (0, 0)))

    kernel = functools.partial(_selfsup_partial_kernel, n_rows=m, tile_m=tm)

    acc = pl.pallas_call(
        kernel,
        out_shape=jax.ShapeDtypeStruct((8, 128), jnp.float32),
        grid_spec=pltpu.PrefetchScalarGridSpec(
            num_scalar_prefetch=0,
            grid=(grid,),
            in_specs=[
                pl.BlockSpec((tm, f_in), lambda i: (i, 0)),      # y_hat rows
                pl.BlockSpec((tm, f_out), lambda i: (i, 0)),     # target rows
                pl.BlockSpec((f_in, f_out), lambda i: (0, 0)),   # W resident
                pl.BlockSpec((1, f_out), lambda i: (0, 0)),      # b resident
            ],
            # Resident lane-dense accumulator: same block every step, HBM
            # writeback happens exactly once after the last grid step.
            out_specs=pl.BlockSpec((8, 128), lambda i: (0, 0)),
        ),
        compiler_params=pltpu.CompilerParams(
            dimension_semantics=("arbitrary",),       # cross-step accumulator
            vmem_limit_bytes=32 * 1024 * 1024,
        ),
    )(x2, t2, w2, b2)

    # Final tiny combine in plain JAX:
    #   mean BCEWithLogits with pos_weight = n/sum(y)  =  A/sum(y) + B/n.
    # NOTE: diverges (inf/nan) if sum(y)==0, exactly like the PyTorch reference.
    a_sum, b_sum, y_sum = acc[0, 0], acc[0, 1], acc[0, 2]
    n_total = jnp.float32(m * f_out)
    return a_sum / y_sum + b_sum / n_total


def reference_loss(y_hat, y, w, b, idxs):
    """Pure-JAX reference mirroring the PyTorch forward (binary=True)."""
    y_f = y.reshape((-1,) + y.shape[-2:])
    yh_f = y_hat.reshape((-1,) + y_hat.shape[-2:])
    y_sel = jnp.take(y_f, idxs, axis=0)[:, 1:, :]
    yh_sel = jnp.take(yh_f, idxs, axis=0)[:, :-1, :]
    logits = yh_sel @ w + b
    pw = 1.0 / jnp.mean(y_sel)
    loss = pw * y_sel * jax.nn.softplus(-logits) + (1.0 - y_sel) * jax.nn.softplus(logits)
    return jnp.mean(loss)


if __name__ == "__main__":
    key = jax.random.PRNGKey(0)
    k1, k2, k3, k4, k5 = jax.random.split(key, 5)

    # Small shapes consistent with the module: y_hat [..., N, T, in_features]
    B, N, T = 2, 4, 9
    in_features, out_features, subsample = 32, 8, 16

    y_hat = jax.random.normal(k1, (B, N, T, in_features), jnp.float32)
    y = (jax.random.uniform(k2, (B, N, T, out_features)) < 0.5).astype(jnp.float32)

    # Deterministic Linear params (torch default: U(-1/sqrt(in), 1/sqrt(in)))
    bound = 1.0 / np.sqrt(in_features)
    w_torch = jax.random.uniform(k3, (out_features, in_features), jnp.float32, -bound, bound)
    b = jax.random.uniform(k4, (out_features,), jnp.float32, -bound, bound)
    w = w_torch.T                                     # (in_features, out_features)

    # torch.randint(high=y_hat.shape[-3], size=(subsample,)) -> deterministic jax RNG
    idxs = jax.random.randint(k5, (subsample,), 0, N)

    # 1) f32 path: tight check against the pure-JAX reference.
    loss_f32 = self_supervise_loss(y_hat, y, w, b, idxs, compute_dtype=jnp.float32)
    loss_f32 = jax.block_until_ready(loss_f32)
    ref_f32 = reference_loss(y_hat, y, w, b, idxs)
    assert np.allclose(np.asarray(loss_f32), np.asarray(ref_f32),
                       rtol=2e-3, atol=2e-3), (loss_f32, ref_f32)

    # 2) bf16 path (perf default): compare against a reference fed the same
    #    bf16-rounded y_hat / W so the check isolates kernel math, not quantization.
    loss_bf16 = self_supervise_loss(y_hat, y, w, b, idxs, compute_dtype=jnp.bfloat16)
    loss_bf16 = jax.block_until_ready(loss_bf16)
    yh_q = y_hat.astype(jnp.bfloat16).astype(jnp.float32)
    w_q = w.astype(jnp.bfloat16).astype(jnp.float32)
    ref_bf16 = reference_loss(yh_q, y, w_q, b, idxs)
    assert np.allclose(np.asarray(loss_bf16), np.asarray(ref_bf16),
                       rtol=2e-3, atol=2e-3), (loss_bf16, ref_bf16)

    print("KERNEL_OK")
</pallas_src>

<mosaic_0001>
module attributes {stable_mosaic.version = 11 : i64} {
  func.func @_selfsup_partial_kernel(%arg0: i32, %arg1: memref<128x32xf32, #tpu.memory_space<vmem>>, %arg2: memref<128x8xf32, #tpu.memory_space<vmem>>, %arg3: memref<32x8xf32, #tpu.memory_space<vmem>>, %arg4: memref<1x8xf32, #tpu.memory_space<vmem>>, %arg5: memref<8x128xf32, #tpu.memory_space<vmem>>) attributes {dimension_semantics = [#tpu.dimension_semantics<arbitrary>], iteration_bounds = array<i64: 1>, scalar_prefetch = 0 : i64, scratch_operands = 0 : i64, tpu.core_type = #tpu.core_type<tc>, window_params = [{transform_indices = @transform_0, window_bounds = array<i64: 128, 32>}, {transform_indices = @transform_1, window_bounds = array<i64: 128, 8>}, {pipeline_mode = #tpu.pipeline_mode<synchronous>, transform_indices = @transform_2, window_bounds = array<i64: 32, 8>}, {pipeline_mode = #tpu.pipeline_mode<synchronous>, transform_indices = @transform_3, window_bounds = array<i64: 1, 8>}, {pipeline_mode = #tpu.pipeline_mode<synchronous>, transform_indices = @transform_4, window_bounds = array<i64: 8, 128>}]} {
    %c0_i32 = arith.constant 0 : i32
    %0 = arith.cmpi eq, %arg0, %c0_i32 : i32
    %1 = arith.extui %0 : i1 to i32
    %c0_i32_0 = arith.constant 0 : i32
    %2 = arith.cmpi ne, %1, %c0_i32_0 : i32
    scf.if %2 {
      %cst_22 = arith.constant 0.000000e+00 : f32
      %70 = vector.broadcast %cst_22 : f32 to vector<8x128xf32>
      %c0_23 = arith.constant 0 : index
      %c0_24 = arith.constant 0 : index
      %71 = vector.load %arg5[%c0_23, %c0_24] : memref<8x128xf32, #tpu.memory_space<vmem>>, vector<8x128xf32>
      tpu.vector_store %arg5[%c0_23, %c0_24], %70 {strides = array<i32>} : memref<8x128xf32, #tpu.memory_space<vmem>>, vector<8x128xf32>,
    } else {
    }
    %c0 = arith.constant 0 : index
    %c0_1 = arith.constant 0 : index
    %3 = vector.load %arg1[%c0, %c0_1] : memref<128x32xf32, #tpu.memory_space<vmem>>, vector<128x32xf32>
    %c0_2 = arith.constant 0 : index
    %c0_3 = arith.constant 0 : index
    %4 = vector.load %arg3[%c0_2, %c0_3] : memref<32x8xf32, #tpu.memory_space<vmem>>, vector<32x8xf32>
    %cst = arith.constant dense<0.000000e+00> : vector<128x8xf32>
    %5 = tpu.matmul %3, %4, %cst {dimension_numbers = #tpu.dot_dimension_numbers<[1], [0], [0], [1], [0, 0, 1, 1], [], []>} : vector<128x32xf32>, vector<32x8xf32>, vector<128x8xf32> -> vector<128x8xf32>
    %c0_4 = arith.constant 0 : index
    %c0_5 = arith.constant 0 : index
    %6 = vector.load %arg4[%c0_4, %c0_5] : memref<1x8xf32, #tpu.memory_space<vmem>>, vector<1x8xf32>
    %7 = vector.broadcast %6 : vector<1x8xf32> to vector<128x8xf32>
    %8 = arith.addf %5, %7 : vector<128x8xf32>
    %cst_6 = arith.constant 0.000000e+00 : f32
    %9 = vector.broadcast %cst_6 : f32 to vector<128x8xf32>
    %10 = arith.subf %9, %8 : vector<128x8xf32>
    %cst_7 = arith.constant 0.000000e+00 : f32
    %11 = vector.broadcast %cst_7 : f32 to vector<128x8xf32>
    %12 = arith.maximumf %10, %11 : vector<128x8xf32>
    %13 = vector.broadcast %cst_7 : f32 to vector<128x8xf32>
    %14 = arith.subf %10, %13 : vector<128x8xf32>
    %15 = arith.cmpf one, %14, %14 : vector<128x8xf32>
    %16 = vector.broadcast %cst_7 : f32 to vector<128x8xf32>
    %17 = arith.addf %10, %16 : vector<128x8xf32>
    %18 = math.absf %14 : vector<128x8xf32>
    %cst_8 = arith.constant 0.000000e+00 : f32
    %19 = vector.broadcast %cst_8 : f32 to vector<128x8xf32>
    %20 = arith.subf %19, %18 : vector<128x8xf32>
    %21 = math.exp %20 : vector<128x8xf32>
    %22 = math.log1p %21 : vector<128x8xf32>
    %23 = arith.addf %12, %22 : vector<128x8xf32>
    %24 = arith.select %15, %17, %23 : vector<128x8xi1>, vector<128x8xf32>
    %25 = arith.addf %24, %8 : vector<128x8xf32>
    %c0_9 = arith.constant 0 : index
    %c0_10 = arith.constant 0 : index
    %26 = vector.load %arg2[%c0_9, %c0_10] : memref<128x8xf32, #tpu.memory_space<vmem>>, vector<128x8xf32>
    %27 = tpu.iota {dimensions = array<i32: 0>} : vector<128x8xi32>
    %c128_i32 = arith.constant 128 : i32
    %28 = arith.muli %arg0, %c128_i32 : i32
    %29 = vector.broadcast %28 : i32 to vector<128x8xi32>
    %30 = arith.addi %27, %29 : vector<128x8xi32>
    %c128_i32_11 = arith.constant 128 : i32
    %31 = vector.broadcast %c128_i32_11 : i32 to vector<128x8xi32>
    %32 = arith.cmpi slt, %30, %31 : vector<128x8xi32>
    %33 = arith.extui %32 : vector<128x8xi1> to vector<128x8xi32>
    %34 = arith.sitofp %33 : vector<128x8xi32> to vector<128x8xf32>
    %35 = arith.mulf %26, %34 : vector<128x8xf32>
    %cst_12 = arith.constant 1.000000e+00 : f32
    %36 = vector.broadcast %cst_12 : f32 to vector<128x8xf32>
    %37 = arith.subf %36, %26 : vector<128x8xf32>
    %38 = arith.mulf %37, %34 : vector<128x8xf32>
    %39 = arith.mulf %35, %24 : vector<128x8xf32>
    %40 = vector.shape_cast %39 : vector<128x8xf32> to vector<1x128x8xf32>
    %cst_13 = arith.constant dense<0.000000e+00> : vector<1xf32>
    %41 = vector.multi_reduction <add>, %40, %cst_13 [1, 2] : vector<1x128x8xf32> to vector<1xf32>
    %42 = vector.shape_cast %41 : vector<1xf32> to vector<1x1x1xf32>
    %43 = vector.extract %42[0, 0, 0] : f32 from vector<1x1x1xf32>
    %44 = arith.mulf %38, %25 : vector<128x8xf32>
    %45 = vector.shape_cast %44 : vector<128x8xf32> to vector<1x128x8xf32>
    %cst_14 = arith.constant dense<0.000000e+00> : vector<1xf32>
    %46 = vector.multi_reduction <add>, %45, %cst_14 [1, 2] : vector<1x128x8xf32> to vector<1xf32>
    %47 = vector.shape_cast %46 : vector<1xf32> to vector<1x1x1xf32>
    %48 = vector.extract %47[0, 0, 0] : f32 from vector<1x1x1xf32>
    %49 = vector.shape_cast %35 : vector<128x8xf32> to vector<1x128x8xf32>
    %cst_15 = arith.constant dense<0.000000e+00> : vector<1xf32>
    %50 = vector.multi_reduction <add>, %49, %cst_15 [1, 2] : vector<1x128x8xf32> to vector<1xf32>
    %51 = vector.shape_cast %50 : vector<1xf32> to vector<1x1x1xf32>
    %52 = vector.extract %51[0, 0, 0] : f32 from vector<1x1x1xf32>
    %53 = tpu.iota {dimensions = array<i32: 1>} : vector<8x128xi32>
    %c0_i32_16 = arith.constant 0 : i32
    %54 = vector.broadcast %c0_i32_16 : i32 to vector<8x128xi32>
    %55 = arith.cmpi eq, %53, %54 : vector<8x128xi32>
    %c1_i32 = arith.constant 1 : i32
    %56 = vector.broadcast %c1_i32 : i32 to vector<8x128xi32>
    %57 = arith.cmpi eq, %53, %56 : vector<8x128xi32>
    %c2_i32 = arith.constant 2 : i32
    %58 = vector.broadcast %c2_i32 : i32 to vector<8x128xi32>
    %59 = arith.cmpi eq, %53, %58 : vector<8x128xi32>
    %cst_17 = arith.constant 0.000000e+00 : f32
    %60 = vector.broadcast %52 : f32 to vector<8x128xf32>
    %61 = vector.broadcast %cst_17 : f32 to vector<8x128xf32>
    %62 = arith.select %59, %60, %61 : vector<8x128xi1>, vector<8x128xf32>
    %63 = vector.broadcast %48 : f32 to vector<8x128xf32>
    %64 = arith.select %57, %63, %62 : vector<8x128xi1>, vector<8x128xf32>
    %65 = vector.broadcast %43 : f32 to vector<8x128xf32>
    %66 = arith.select %55, %65, %64 : vector<8x128xi1>, vector<8x128xf32>
    %c0_18 = arith.constant 0 : index
    %c0_19 = arith.constant 0 : index
    %67 = vector.load %arg5[%c0_18, %c0_19] : memref<8x128xf32, #tpu.memory_space<vmem>>, vector<8x128xf32>
    %68 = arith.addf %67, %66 : vector<8x128xf32>
    %c0_20 = arith.constant 0 : index
    %c0_21 = arith.constant 0 : index
    %69 = vector.load %arg5[%c0_20, %c0_21] : memref<8x128xf32, #tpu.memory_space<vmem>>, vector<8x128xf32>
    tpu.vector_store %arg5[%c0_20, %c0_21], %68 {strides = array<i32>} : memref<8x128xf32, #tpu.memory_space<vmem>>, vector<8x128xf32>,
    return
  }
  func.func @transform_0(%arg0: i32) -> (i32, i32) {
    %c0_i32 = arith.constant 0 : i32
    %c0_i32_0 = arith.constant 0 : i32
    return %arg0, %c0_i32 : i32, i32
  }
  func.func @transform_1(%arg0: i32) -> (i32, i32) {
    %c0_i32 = arith.constant 0 : i32
    %c0_i32_0 = arith.constant 0 : i32
    return %arg0, %c0_i32 : i32, i32
  }
  func.func @transform_2(%arg0: i32) -> (i32, i32) {
    %c0_i32 = arith.constant 0 : i32
    %c0_i32_0 = arith.constant 0 : i32
    %c0_i32_1 = arith.constant 0 : i32
    return %c0_i32, %c0_i32_0 : i32, i32
  }
  func.func @transform_3(%arg0: i32) -> (i32, i32) {
    %c0_i32 = arith.constant 0 : i32
    %c0_i32_0 = arith.constant 0 : i32
    %c0_i32_1 = arith.constant 0 : i32
    return %c0_i32, %c0_i32_0 : i32, i32
  }
  func.func @transform_4(%arg0: i32) -> (i32, i32) {
    %c0_i32 = arith.constant 0 : i32
    %c0_i32_0 = arith.constant 0 : i32
    %c0_i32_1 = arith.constant 0 : i32
    return %c0_i32, %c0_i32_0 : i32, i32
  }
}

</mosaic_0001>

<llo_original>
// kernel: tpu_custom_call.1
$region0: #{tpu_custom_call.1}
  #allocation0 [shape = 'u32[]', space=smem, size = 0x4, offset = 0x4, fixed_abs, tag = 'smem constant byte address 0x4 - core index']
  #allocation1 [shape = 'u32[144,128]{1,0:T(1,128)}', space=vmem, size = 0x12000, scoped, tag = 'internal scratch']
  %s0 = inlined_call_operand.vmem [shape: f32[128,32], index: 0, kind: input, shape index: {}]
  %s1 = inlined_call_operand.vmem [shape: f32[128,8], index: 1, kind: input, shape index: {}]
  %s2 = inlined_call_operand.vmem [shape: f32[32,8], index: 2, kind: input, shape index: {}]
  %s3 = inlined_call_operand.vmem [shape: f32[1,8], index: 3, kind: input, shape index: {}]
  %s4 = inlined_call_operand.hbm [shape: f32[8,128], index: 4, kind: output, shape index: {}]
  %s5 = sld [smem:[#allocation0]]
  $region30: #{tpu_custom_call.1} parent=0
    _
  %s7 = ssub.s32 1, %s5
  %s8 = scalar_select 0, %s7, %s5
  $region1: #{tpu_custom_call.1} parent=0
    #allocation2 [shape = 'u8[4096]{0}', space=vmem, size = 0x1000, scoped, tag = 'output window, operand 0, single buffered']
    #allocation3 [shape = 's32[1]{0}', space=sflag, size = 0x4, scoped, tag = 'scoped memory for tpu_custom_call.1']
    %9 = vsyncpa [#allocation3], 0
    // Predicated region
    $region2: #{tpu_custom_call.1} parent=1 // pred_check
      _
    $region3: #{tpu_custom_call.1} parent=1 // pred_check_branch
      %11 = sbr.rel (0) target = $region5
    $region4: #{tpu_custom_call.1} parent=1 // pred_region
      _
    $region5: #{tpu_custom_call.1} parent=1 // pred_fallthru
      _
    // Predicated region
    $region6: #{tpu_custom_call.1} parent=1 // pred_check
      _
    $region7: #{tpu_custom_call.1} parent=1 // pred_check_branch
      %13 = sbr.rel (0) target = $region9
    $region8: #{tpu_custom_call.1} parent=1 // pred_region
      _
    $region9: #{tpu_custom_call.1} parent=1 // pred_fallthru
      _
    // Predicated region
    $region10: #{tpu_custom_call.1} parent=1 // pred_check
      _
    $region11: #{tpu_custom_call.1} parent=1 // pred_check_branch
      %15 = sbr.rel (0) target = $region13
    $region12: #{tpu_custom_call.1} parent=1 // pred_region
      _
    $region13: #{tpu_custom_call.1} parent=1 // pred_fallthru
      _
    // Predicated region
    $region14: #{tpu_custom_call.1} parent=1 // pred_check
      _
    $region15: #{tpu_custom_call.1} parent=1 // pred_check_branch
      %17 = sbr.rel (0) target = $region17
    $region16: #{tpu_custom_call.1} parent=1 // pred_region
      _
    $region17: #{tpu_custom_call.1} parent=1 // pred_fallthru
      _
    %p18 = scmp.eq.s32.totalorder 0, 0
    // Predicated region
    $region18: #{tpu_custom_call.1} parent=1 // pred_check
      %p19 = pneg %p18
    $region19: #{tpu_custom_call.1} parent=1 // pred_check_branch
      %21 = sbr.rel (%p19) target = $region21
    $region20: #{tpu_custom_call.1} parent=1 // pred_region
      %22 = vst [vmem:[#allocation2] sm:$0xff] 0.0
    $region21: #{tpu_custom_call.1} parent=1 // pred_fallthru
      _
    %v23 = vld [vmem:[%s0] sm:$0xff]
    %v24 = vld [vmem:[%s0 + $0x8] sm:$0xff]
    %v25 = vld [vmem:[%s0 + $0x10] sm:$0xff]
    %v26 = vld [vmem:[%s0 + $0x18] sm:$0xff]
    %v27 = vld [vmem:[%s0 + $0x20] sm:$0xff]
    %v28 = vld [vmem:[%s0 + $0x28] sm:$0xff]
    %v29 = vld [vmem:[%s0 + $0x30] sm:$0xff]
    %v30 = vld [vmem:[%s0 + $0x38] sm:$0xff]
    %v31 = vld [vmem:[%s0 + $0x40] sm:$0xff]
    %v32 = vld [vmem:[%s0 + $0x48] sm:$0xff]
    %v33 = vld [vmem:[%s0 + $0x50] sm:$0xff]
    %v34 = vld [vmem:[%s0 + $0x58] sm:$0xff]
    %v35 = vld [vmem:[%s0 + $0x60] sm:$0xff]
    %v36 = vld [vmem:[%s0 + $0x68] sm:$0xff]
    %v37 = vld [vmem:[%s0 + $0x70] sm:$0xff]
    %v38 = vld [vmem:[%s0 + $0x78] sm:$0xff]
    %v39 = vld [vmem:[%s2] sm:$0xff]
    %v40 = vld [vmem:[%s2 + $0x8] sm:$0xff]
    %v41 = vld [vmem:[%s2 + $0x10] sm:$0xff]
    %v42 = vld [vmem:[%s2 + $0x18] sm:$0xff]
    %v43 = vld [vmem:[%s3] sm:$0x1]
    %v45 = vlaneseq
    %v46 = vshrl.u32 %v45, 7
    %v47 = vsub.s32 0, %v46
    %v48 = vrot.slane %v43, %v47
    %vm50 = vcmask 261120
    %v52 = vsel %vm50, %v23, 0
    %v55 = vsel %vm50, %v24, 0
    %v58 = vsel %vm50, %v25, 0
    %v61 = vsel %vm50, %v26, 0
    %v64 = vsel %vm50, %v27, 0
    %v67 = vsel %vm50, %v28, 0
    %v70 = vsel %vm50, %v29, 0
    %v73 = vsel %vm50, %v30, 0
    %v76 = vsel %vm50, %v31, 0
    %v79 = vsel %vm50, %v32, 0
    %v82 = vsel %vm50, %v33, 0
    %v85 = vsel %vm50, %v34, 0
    %v88 = vsel %vm50, %v35, 0
    %v91 = vsel %vm50, %v36, 0
    %v94 = vsel %vm50, %v37, 0
    %v97 = vsel %vm50, %v38, 0
    %99 = vmatprep.subr.mxu0 0.0
    %100 = vmatpush1.msra.mxu0 %v39
    %101 = vmatprep.subr.mxu0 0.0
    %102 = vmatpush1.msra.mxu0 %v40
    %103 = vmatprep.subr.mxu0 0.0
    %104 = vmatpush1.msra.mxu0 %v41
    %105 = vmatprep.subr.mxu0 0.0
    %106 = vmatpush1.msra.mxu0 %v42
    %107 = vmatprep.subr.mxu0 0.0
    %108 = vmatpush1.msra.mxu0 0.0
    %109 = vmatprep.subr.mxu0 0.0
    %110 = vmatpush1.msra.mxu0 0.0
    %111 = vmatprep.subr.mxu0 0.0
    %112 = vmatpush1.msra.mxu0 0.0
    %113 = vmatprep.subr.mxu0 0.0
    %114 = vmatpush1.msra.mxu0 0.0
    %115 = vmatprep.subr.mxu0 0.0
    %116 = vmatpush1.msra.mxu0 0.0
    %117 = vmatprep.subr.mxu0 0.0
    %118 = vmatpush1.msra.mxu0 0.0
    %119 = vmatprep.subr.mxu0 0.0
    %120 = vmatpush1.msra.mxu0 0.0
    %121 = vmatprep.subr.mxu0 0.0
    %122 = vmatpush1.msra.mxu0 0.0
    %123 = vmatprep.subr.mxu0 0.0
    %124 = vmatpush1.msra.mxu0 0.0
    %125 = vmatprep.subr.mxu0 0.0
    %126 = vmatpush1.msra.mxu0 0.0
    %127 = vmatprep.subr.mxu0 0.0
    %128 = vmatpush1.msra.mxu0 0.0
    %129 = vmatprep.subr.mxu0 0.0
    %130 = vmatpush1.msra.mxu0 0.0
    %131 = vmatprep.subr.mxu0 0.0
    %132 = vmatpush1.msra.mxu0 0.0
    %133 = vmatprep.subr.mxu0 0.0
    %134 = vmatpush1.msra.mxu0 0.0
    %135 = vmatprep.subr.mxu0 0.0
    %136 = vmatpush1.msra.mxu0 0.0
    %137 = vmatprep.subr.mxu0 0.0
    %138 = vmatpush1.msra.mxu0 0.0
    %139 = vmatprep.subr.mxu0 0.0
    %140 = vmatpush1.msra.mxu0 0.0
    %141 = vmatprep.subr.mxu0 0.0
    %142 = vmatpush1.msra.mxu0 0.0
    %143 = vmatprep.subr.mxu0 0.0
    %144 = vmatpush1.msra.mxu0 0.0
    %145 = vmatprep.subr.mxu0 0.0
    %146 = vmatpush1.msra.mxu0 0.0
    %147 = vmatprep.subr.mxu0 0.0
    %148 = vmatpush1.msra.mxu0 0.0
    %149 = vmatprep.subr.mxu0 0.0
    %150 = vmatpush1.msra.mxu0 0.0
    %151 = vmatprep.subr.mxu0 0.0
    %152 = vmatpush1.msra.mxu0 0.0
    %153 = vmatprep.subr.mxu0 0.0
    %154 = vmatpush1.msra.mxu0 0.0
    %155 = vmatprep.subr.mxu0 0.0
    %156 = vmatpush1.msra.mxu0 0.0
    %157 = vmatprep.subr.mxu0 0.0
    %158 = vmatpush1.msra.mxu0 0.0
    %159 = vmatprep.subr.mxu0 0.0
    %160 = vmatpush1.msra.mxu0 0.0
    %161 = vmatprep.subr.mxu0 0.0
    %162 = vmatpush1.msra.mxu0 0.0
    %163 = vmatprep.mubr.f32.mxu0 0.0
    %164 = vmatmul.mubr.f32.gmra.mrb[0].mxu0 %v52
    %v165 = vpop.f32.mrb[0].mxu0
    %v166 = vadd.f32 %v48, %v165
    %v167 = vpop.f32.mrb[0].mxu0
    %168 = vmatprep.mubr.f32.mxu0 0.0
    %169 = vmatmul.mubr.f32.gmra.mrb[0].mxu0 %v55
    %v170 = vpop.f32.mrb[0].mxu0
    %v171 = vadd.f32 %v48, %v170
    %v172 = vpop.f32.mrb[0].mxu0
    %173 = vmatprep.mubr.f32.mxu0 0.0
    %174 = vmatmul.mubr.f32.gmra.mrb[0].mxu0 %v58
    %v175 = vpop.f32.mrb[0].mxu0
    %v176 = vadd.f32 %v48, %v175
    %v177 = vpop.f32.mrb[0].mxu0
    %178 = vmatprep.mubr.f32.mxu0 0.0
    %179 = vmatmul.mubr.f32.gmra.mrb[0].mxu0 %v61
    %v180 = vpop.f32.mrb[0].mxu0
    %v181 = vadd.f32 %v48, %v180
    %v182 = vpop.f32.mrb[0].mxu0
    %183 = vmatprep.mubr.f32.mxu0 0.0
    %184 = vmatmul.mubr.f32.gmra.mrb[0].mxu0 %v64
    %v185 = vpop.f32.mrb[0].mxu0
    %v186 = vadd.f32 %v48, %v185
    %v187 = vpop.f32.mrb[0].mxu0
    %188 = vmatprep.mubr.f32.mxu0 0.0
    %189 = vmatmul.mubr.f32.gmra.mrb[0].mxu0 %v67
    %v190 = vpop.f32.mrb[0].mxu0
    %v191 = vadd.f32 %v48, %v190
    %v192 = vpop.f32.mrb[0].mxu0
    %193 = vmatprep.mubr.f32.mxu0 0.0
    %194 = vmatmul.mubr.f32.gmra.mrb[0].mxu0 %v70
    %v195 = vpop.f32.mrb[0].mxu0
    %v196 = vadd.f32 %v48, %v195
    %v197 = vpop.f32.mrb[0].mxu0
    %198 = vmatprep.mubr.f32.mxu0 0.0
    %199 = vmatmul.mubr.f32.gmra.mrb[0].mxu0 %v73
    %v200 = vpop.f32.mrb[0].mxu0
    %v201 = vadd.f32 %v48, %v200
    %v202 = vpop.f32.mrb[0].mxu0
    %203 = vmatprep.mubr.f32.mxu0 0.0
    %204 = vmatmul.mubr.f32.gmra.mrb[0].mxu0 %v76
    %v205 = vpop.f32.mrb[0].mxu0
    %v206 = vadd.f32 %v48, %v205
    %v207 = vpop.f32.mrb[0].mxu0
    %208 = vmatprep.mubr.f32.mxu0 0.0
    %209 = vmatmul.mubr.f32.gmra.mrb[0].mxu0 %v79
    %v210 = vpop.f32.mrb[0].mxu0
    %v211 = vadd.f32 %v48, %v210
    %v212 = vpop.f32.mrb[0].mxu0
    %213 = vmatprep.mubr.f32.mxu0 0.0
    %214 = vmatmul.mubr.f32.gmra.mrb[0].mxu0 %v82
    %v215 = vpop.f32.mrb[0].mxu0
    %v216 = vadd.f32 %v48, %v215
    %v217 = vpop.f32.mrb[0].mxu0
    %218 = vmatprep.mubr.f32.mxu0 0.0
    %219 = vmatmul.mubr.f32.gmra.mrb[0].mxu0 %v85
    %v220 = vpop.f32.mrb[0].mxu0
    %v221 = vadd.f32 %v48, %v220
    %v222 = vpop.f32.mrb[0].mxu0
    %223 = vmatprep.mubr.f32.mxu0 0.0
    %224 = vmatmul.mubr.f32.gmra.mrb[0].mxu0 %v88
    %v225 = vpop.f32.mrb[0].mxu0
    %v226 = vadd.f32 %v48, %v225
    %v227 = vpop.f32.mrb[0].mxu0
    %228 = vmatprep.mubr.f32.mxu0 0.0
    %229 = vmatmul.mubr.f32.gmra.mrb[0].mxu0 %v91
    %v230 = vpop.f32.mrb[0].mxu0
    %v231 = vadd.f32 %v48, %v230
    %v232 = vpop.f32.mrb[0].mxu0
    %233 = vmatprep.mubr.f32.mxu0 0.0
    %234 = vmatmul.mubr.f32.gmra.mrb[0].mxu0 %v94
    %v235 = vpop.f32.mrb[0].mxu0
    %v236 = vadd.f32 %v48, %v235
    %v237 = vpop.f32.mrb[0].mxu0
    %238 = vmatprep.mubr.f32.mxu0 0.0
    %239 = vmatmul.mubr.f32.gmra.mrb[0].mxu0 %v97
    %v240 = vpop.f32.mrb[0].mxu0
    %v241 = vadd.f32 %v48, %v240
    %v242 = vpop.f32.mrb[0].mxu0
    %243 = vdwg.mxu0
    %v244 = vsub.f32 0.0, %v166
    %v245 = vsub.f32 0.0, %v171
    %v246 = vsub.f32 0.0, %v176
    %v247 = vsub.f32 0.0, %v181
    %v248 = vsub.f32 0.0, %v186
    %v249 = vsub.f32 0.0, %v191
    %v250 = vsub.f32 0.0, %v196
    %v251 = vsub.f32 0.0, %v201
    %v252 = vsub.f32 0.0, %v206
    %v253 = vsub.f32 0.0, %v211
    %v254 = vsub.f32 0.0, %v216
    %v255 = vsub.f32 0.0, %v221
    %v256 = vsub.f32 0.0, %v226
    %v257 = vsub.f32 0.0, %v231
    %v258 = vsub.f32 0.0, %v236
    %v259 = vsub.f32 0.0, %v241
    %v260 = vmax.f32 %v244, 0.0
    %v261 = vmax.f32 %v245, 0.0
    %v262 = vmax.f32 %v246, 0.0
    %v263 = vmax.f32 %v247, 0.0
    %v264 = vmax.f32 %v248, 0.0
    %v265 = vmax.f32 %v249, 0.0
    %v266 = vmax.f32 %v250, 0.0
    %v267 = vmax.f32 %v251, 0.0
    %v268 = vmax.f32 %v252, 0.0
    %v269 = vmax.f32 %v253, 0.0
    %v270 = vmax.f32 %v254, 0.0
    %v271 = vmax.f32 %v255, 0.0
    %v272 = vmax.f32 %v256, 0.0
    %v273 = vmax.f32 %v257, 0.0
    %v274 = vmax.f32 %v258, 0.0
    %v275 = vmax.f32 %v259, 0.0
    %vm276 = vcmp.ne.f32.partialorder %v244, %v244
    %vm277 = vcmp.ne.f32.partialorder %v245, %v245
    %vm278 = vcmp.ne.f32.partialorder %v246, %v246
    %vm279 = vcmp.ne.f32.partialorder %v247, %v247
    %vm280 = vcmp.ne.f32.partialorder %v248, %v248
    %vm281 = vcmp.ne.f32.partialorder %v249, %v249
    %vm282 = vcmp.ne.f32.partialorder %v250, %v250
    %vm283 = vcmp.ne.f32.partialorder %v251, %v251
    %vm284 = vcmp.ne.f32.partialorder %v252, %v252
    %vm285 = vcmp.ne.f32.partialorder %v253, %v253
    %vm286 = vcmp.ne.f32.partialorder %v254, %v254
    %vm287 = vcmp.ne.f32.partialorder %v255, %v255
    %vm288 = vcmp.ne.f32.partialorder %v256, %v256
    %vm289 = vcmp.ne.f32.partialorder %v257, %v257
    %vm290 = vcmp.ne.f32.partialorder %v258, %v258
    %vm291 = vcmp.ne.f32.partialorder %v259, %v259
    %v292 = vadd.f32 %v244, 0.0
    %v293 = vadd.f32 %v245, 0.0
    %v294 = vadd.f32 %v246, 0.0
    %v295 = vadd.f32 %v247, 0.0
    %v296 = vadd.f32 %v248, 0.0
    %v297 = vadd.f32 %v249, 0.0
    %v298 = vadd.f32 %v250, 0.0
    %v299 = vadd.f32 %v251, 0.0
    %v300 = vadd.f32 %v252, 0.0
    %v301 = vadd.f32 %v253, 0.0
    %v302 = vadd.f32 %v254, 0.0
    %v303 = vadd.f32 %v255, 0.0
    %v304 = vadd.f32 %v256, 0.0
    %v305 = vadd.f32 %v257, 0.0
    %v306 = vadd.f32 %v258, 0.0
    %v307 = vadd.f32 %v259, 0.0
    %v308 = vand.u32 2147483647, %v244
    %v309 = vand.u32 2147483647, %v245
    %v310 = vand.u32 2147483647, %v246
    %v311 = vand.u32 2147483647, %v247
    %v312 = vand.u32 2147483647, %v248
    %v313 = vand.u32 2147483647, %v249
    %v314 = vand.u32 2147483647, %v250
    %v315 = vand.u32 2147483647, %v251
    %v316 = vand.u32 2147483647, %v252
    %v317 = vand.u32 2147483647, %v253
    %v318 = vand.u32 2147483647, %v254
    %v319 = vand.u32 2147483647, %v255
    %v320 = vand.u32 2147483647, %v256
    %v321 = vand.u32 2147483647, %v257
    %v322 = vand.u32 2147483647, %v258
    %v323 = vand.u32 2147483647, %v259
    %v324 = vsub.f32 0.0, %v308
    %v325 = vsub.f32 0.0, %v309
    %v326 = vsub.f32 0.0, %v310
    %v327 = vsub.f32 0.0, %v311
    %v328 = vsub.f32 0.0, %v312
    %v329 = vsub.f32 0.0, %v313
    %v330 = vsub.f32 0.0, %v314
    %v331 = vsub.f32 0.0, %v315
    %v332 = vsub.f32 0.0, %v316
    %v333 = vsub.f32 0.0, %v317
    %v334 = vsub.f32 0.0, %v318
    %v335 = vsub.f32 0.0, %v319
    %v336 = vsub.f32 0.0, %v320
    %v337 = vsub.f32 0.0, %v321
    %v338 = vsub.f32 0.0, %v322
    %v339 = vsub.f32 0.0, %v323
    %v340 = vmul.f32 %v324, 1.442695
    %v341 = vpow.pop %v340
    %v342 = vmul.f32 %v325, 1.442695
    %v343 = vpow.pop %v342
    %v344 = vmul.f32 %v326, 1.442695
    %v345 = vpow.pop %v344
    %v346 = vmul.f32 %v327, 1.442695
    %v347 = vpow.pop %v346
    %v348 = vmul.f32 %v328, 1.442695
    %v349 = vpow.pop %v348
    %v350 = vmul.f32 %v329, 1.442695
    %v351 = vpow.pop %v350
    %v352 = vmul.f32 %v330, 1.442695
    %v353 = vpow.pop %v352
    %v354 = vmul.f32 %v331, 1.442695
    %v355 = vpow.pop %v354
    %v356 = vmul.f32 %v332, 1.442695
    %v357 = vpow.pop %v356
    %v358 = vmul.f32 %v333, 1.442695
    %v359 = vpow.pop %v358
    %v360 = vmul.f32 %v334, 1.442695
    %v361 = vpow.pop %v360
    %v362 = vmul.f32 %v335, 1.442695
    %v363 = vpow.pop %v362
    %v364 = vmul.f32 %v336, 1.442695
    %v365 = vpow.pop %v364
    %v366 = vmul.f32 %v337, 1.442695
    %v367 = vpow.pop %v366
    %v368 = vmul.f32 %v338, 1.442695
    %v369 = vpow.pop %v368
    %v370 = vmul.f32 %v339, 1.442695
    %v371 = vpow.pop %v370
    %v372 = vadd.f32 %v341, 1.0
    %v373 = vlog2.pop %v372
    %v374 = vmul.f32 %v373, 0.6931472
    %v375 = vmul.f32 -0.5, %v341
    %v376 = vadd.f32 %v375, 1.0
    %v377 = vmul.f32 %v376, %v341
    %v378 = vand.u32 2147483647, %v341
    %vm379 = vcmp.lt.f32.partialorder %v378, 0.0004427343
    %v380 = vsel %vm379, %v377, %v374
    %v381 = vadd.f32 %v343, 1.0
    %v382 = vlog2.pop %v381
    %v383 = vmul.f32 %v382, 0.6931472
    %v384 = vmul.f32 -0.5, %v343
    %v385 = vadd.f32 %v384, 1.0
    %v386 = vmul.f32 %v385, %v343
    %v387 = vand.u32 2147483647, %v343
    %vm388 = vcmp.lt.f32.partialorder %v387, 0.0004427343
    %v389 = vsel %vm388, %v386, %v383
    %v390 = vadd.f32 %v345, 1.0
    %v391 = vlog2.pop %v390
    %v392 = vmul.f32 %v391, 0.6931472
    %v393 = vmul.f32 -0.5, %v345
    %v394 = vadd.f32 %v393, 1.0
    %v395 = vmul.f32 %v394, %v345
    %v396 = vand.u32 2147483647, %v345
    %vm397 = vcmp.lt.f32.partialorder %v396, 0.0004427343
    %v398 = vsel %vm397, %v395, %v392
    %v399 = vadd.f32 %v347, 1.0
    %v400 = vlog2.pop %v399
    %v401 = vmul.f32 %v400, 0.6931472
    %v402 = vmul.f32 -0.5, %v347
    %v403 = vadd.f32 %v402, 1.0
    %v404 = vmul.f32 %v403, %v347
    %v405 = vand.u32 2147483647, %v347
    %vm406 = vcmp.lt.f32.partialorder %v405, 0.0004427343
    %v407 = vsel %vm406, %v404, %v401
    %v408 = vadd.f32 %v349, 1.0
    %v409 = vlog2.pop %v408
    %v410 = vmul.f32 %v409, 0.6931472
    %v411 = vmul.f32 -0.5, %v349
    %v412 = vadd.f32 %v411, 1.0
    %v413 = vmul.f32 %v412, %v349
    %v414 = vand.u32 2147483647, %v349
    %vm415 = vcmp.lt.f32.partialorder %v414, 0.0004427343
    %v416 = vsel %vm415, %v413, %v410
    %v417 = vadd.f32 %v351, 1.0
    %v418 = vlog2.pop %v417
    %v419 = vmul.f32 %v418, 0.6931472
    %v420 = vmul.f32 -0.5, %v351
    %v421 = vadd.f32 %v420, 1.0
    %v422 = vmul.f32 %v421, %v351
    %v423 = vand.u32 2147483647, %v351
    %vm424 = vcmp.lt.f32.partialorder %v423, 0.0004427343
    %v425 = vsel %vm424, %v422, %v419
    %v426 = vadd.f32 %v353, 1.0
    %v427 = vlog2.pop %v426
    %v428 = vmul.f32 %v427, 0.6931472
    %v429 = vmul.f32 -0.5, %v353
    %v430 = vadd.f32 %v429, 1.0
    %v431 = vmul.f32 %v430, %v353
    %v432 = vand.u32 2147483647, %v353
    %vm433 = vcmp.lt.f32.partialorder %v432, 0.0004427343
    %v434 = vsel %vm433, %v431, %v428
    %v435 = vadd.f32 %v355, 1.0
    %v436 = vlog2.pop %v435
    %v437 = vmul.f32 %v436, 0.6931472
    %v438 = vmul.f32 -0.5, %v355
    %v439 = vadd.f32 %v438, 1.0
    %v440 = vmul.f32 %v439, %v355
    %v441 = vand.u32 2147483647, %v355
    %vm442 = vcmp.lt.f32.partialorder %v441, 0.0004427343
    %v443 = vsel %vm442, %v440, %v437
    %v444 = vadd.f32 %v357, 1.0
    %v445 = vlog2.pop %v444
    %v446 = vmul.f32 %v445, 0.6931472
    %v447 = vmul.f32 -0.5, %v357
    %v448 = vadd.f32 %v447, 1.0
    %v449 = vmul.f32 %v448, %v357
    %v450 = vand.u32 2147483647, %v357
    %vm451 = vcmp.lt.f32.partialorder %v450, 0.0004427343
    %v452 = vsel %vm451, %v449, %v446
    %v453 = vadd.f32 %v359, 1.0
    %v454 = vlog2.pop %v453
    %v455 = vmul.f32 %v454, 0.6931472
    %v456 = vmul.f32 -0.5, %v359
    %v457 = vadd.f32 %v456, 1.0
    %v458 = vmul.f32 %v457, %v359
    %v459 = vand.u32 2147483647, %v359
    %vm460 = vcmp.lt.f32.partialorder %v459, 0.0004427343
    %v461 = vsel %vm460, %v458, %v455
    %v462 = vadd.f32 %v361, 1.0
    %v463 = vlog2.pop %v462
    %v464 = vmul.f32 %v463, 0.6931472
    %v465 = vmul.f32 -0.5, %v361
    %v466 = vadd.f32 %v465, 1.0
    %v467 = vmul.f32 %v466, %v361
    %v468 = vand.u32 2147483647, %v361
    %vm469 = vcmp.lt.f32.partialorder %v468, 0.0004427343
    %v470 = vsel %vm469, %v467, %v464
    %v471 = vadd.f32 %v363, 1.0
    %v472 = vlog2.pop %v471
    %v473 = vmul.f32 %v472, 0.6931472
    %v474 = vmul.f32 -0.5, %v363
    %v475 = vadd.f32 %v474, 1.0
    %v476 = vmul.f32 %v475, %v363
    %v477 = vand.u32 2147483647, %v363
    %vm478 = vcmp.lt.f32.partialorder %v477, 0.0004427343
    %v479 = vsel %vm478, %v476, %v473
    %v480 = vadd.f32 %v365, 1.0
    %v481 = vlog2.pop %v480
    %v482 = vmul.f32 %v481, 0.6931472
    %v483 = vmul.f32 -0.5, %v365
    %v484 = vadd.f32 %v483, 1.0
    %v485 = vmul.f32 %v484, %v365
    %v486 = vand.u32 2147483647, %v365
    %vm487 = vcmp.lt.f32.partialorder %v486, 0.0004427343
    %v488 = vsel %vm487, %v485, %v482
    %v489 = vadd.f32 %v367, 1.0
    %v490 = vlog2.pop %v489
    %v491 = vmul.f32 %v490, 0.6931472
    %v492 = vmul.f32 -0.5, %v367
    %v493 = vadd.f32 %v492, 1.0
    %v494 = vmul.f32 %v493, %v367
    %v495 = vand.u32 2147483647, %v367
    %vm496 = vcmp.lt.f32.partialorder %v495, 0.0004427343
    %v497 = vsel %vm496, %v494, %v491
    %v498 = vadd.f32 %v369, 1.0
    %v499 = vlog2.pop %v498
    %v500 = vmul.f32 %v499, 0.6931472
    %v501 = vmul.f32 -0.5, %v369
    %v502 = vadd.f32 %v501, 1.0
    %v503 = vmul.f32 %v502, %v369
    %v504 = vand.u32 2147483647, %v369
    %vm505 = vcmp.lt.f32.partialorder %v504, 0.0004427343
    %v506 = vsel %vm505, %v503, %v500
    %v507 = vadd.f32 %v371, 1.0
    %v508 = vlog2.pop %v507
    %v509 = vmul.f32 %v508, 0.6931472
    %v510 = vmul.f32 -0.5, %v371
    %v511 = vadd.f32 %v510, 1.0
    %v512 = vmul.f32 %v511, %v371
    %v513 = vand.u32 2147483647, %v371
    %vm514 = vcmp.lt.f32.partialorder %v513, 0.0004427343
    %v515 = vsel %vm514, %v512, %v509
    %v516 = vadd.f32 %v260, %v380
    %v517 = vadd.f32 %v261, %v389
    %v518 = vadd.f32 %v262, %v398
    %v519 = vadd.f32 %v263, %v407
    %v520 = vadd.f32 %v264, %v416
    %v521 = vadd.f32 %v265, %v425
    %v522 = vadd.f32 %v266, %v434
    %v523 = vadd.f32 %v267, %v443
    %v524 = vadd.f32 %v268, %v452
    %v525 = vadd.f32 %v269, %v461
    %v526 = vadd.f32 %v270, %v470
    %v527 = vadd.f32 %v271, %v479
    %v528 = vadd.f32 %v272, %v488
    %v529 = vadd.f32 %v273, %v497
    %v530 = vadd.f32 %v274, %v506
    %v531 = vadd.f32 %v275, %v515
    %v532 = vsel %vm276, %v292, %v516
    %v533 = vsel %vm277, %v293, %v517
    %v534 = vsel %vm278, %v294, %v518
    %v535 = vsel %vm279, %v295, %v519
    %v536 = vsel %vm280, %v296, %v520
    %v537 = vsel %vm281, %v297, %v521
    %v538 = vsel %vm282, %v298, %v522
    %v539 = vsel %vm283, %v299, %v523
    %v540 = vsel %vm284, %v300, %v524
    %v541 = vsel %vm285, %v301, %v525
    %v542 = vsel %vm286, %v302, %v526
    %v543 = vsel %vm287, %v303, %v527
    %v544 = vsel %vm288, %v304, %v528
    %v545 = vsel %vm289, %v305, %v529
    %v546 = vsel %vm290, %v306, %v530
    %v547 = vsel %vm291, %v307, %v531
    %v548 = vadd.f32 %v532, %v166
    %v549 = vadd.f32 %v533, %v171
    %v550 = vadd.f32 %v534, %v176
    %v551 = vadd.f32 %v535, %v181
    %v552 = vadd.f32 %v536, %v186
    %v553 = vadd.f32 %v537, %v191
    %v554 = vadd.f32 %v538, %v196
    %v555 = vadd.f32 %v539, %v201
    %v556 = vadd.f32 %v540, %v206
    %v557 = vadd.f32 %v541, %v211
    %v558 = vadd.f32 %v542, %v216
    %v559 = vadd.f32 %v543, %v221
    %v560 = vadd.f32 %v544, %v226
    %v561 = vadd.f32 %v545, %v231
    %v562 = vadd.f32 %v546, %v236
    %v563 = vadd.f32 %v547, %v241
    %v564 = vld [vmem:[%s1] sm:$0xff]
    %v565 = vld [vmem:[%s1 + $0x8] sm:$0xff]
    %v566 = vld [vmem:[%s1 + $0x10] sm:$0xff]
    %v567 = vld [vmem:[%s1 + $0x18] sm:$0xff]
    %v568 = vld [vmem:[%s1 + $0x20] sm:$0xff]
    %v569 = vld [vmem:[%s1 + $0x28] sm:$0xff]
    %v570 = vld [vmem:[%s1 + $0x30] sm:$0xff]
    %v571 = vld [vmem:[%s1 + $0x38] sm:$0xff]
    %v572 = vld [vmem:[%s1 + $0x40] sm:$0xff]
    %v573 = vld [vmem:[%s1 + $0x48] sm:$0xff]
    %v574 = vld [vmem:[%s1 + $0x50] sm:$0xff]
    %v575 = vld [vmem:[%s1 + $0x58] sm:$0xff]
    %v576 = vld [vmem:[%s1 + $0x60] sm:$0xff]
    %v577 = vld [vmem:[%s1 + $0x68] sm:$0xff]
    %v578 = vld [vmem:[%s1 + $0x70] sm:$0xff]
    %v579 = vld [vmem:[%s1 + $0x78] sm:$0xff]
    %v580 = vlaneseq
    %v581 = vshrl.u32 %v580, 7
    %v582 = vadd.s32 %v581, 8
    %v583 = vadd.s32 %v581, 16
    %v584 = vadd.s32 %v581, 24
    %v585 = vadd.s32 %v581, 32
    %v586 = vadd.s32 %v581, 40
    %v587 = vadd.s32 %v581, 48
    %v588 = vadd.s32 %v581, 56
    %v589 = vadd.s32 %v581, 64
    %v590 = vadd.s32 %v581, 72
    %v591 = vadd.s32 %v581, 80
    %v592 = vadd.s32 %v581, 88
    %v593 = vadd.s32 %v581, 96
    %v594 = vadd.s32 %v581, 104
    %v595 = vadd.s32 %v581, 112
    %v596 = vadd.s32 %v581, 120
    %s597 = smul.u32 0, 128
    %v598 = vstv %s597
    %v599 = vadd.s32 %v581, %v598
    %v600 = vadd.s32 %v582, %v598
    %v601 = vadd.s32 %v583, %v598
    %v602 = vadd.s32 %v584, %v598
    %v603 = vadd.s32 %v585, %v598
    %v604 = vadd.s32 %v586, %v598
    %v605 = vadd.s32 %v587, %v598
    %v606 = vadd.s32 %v588, %v598
    %v607 = vadd.s32 %v589, %v598
    %v608 = vadd.s32 %v590, %v598
    %v609 = vadd.s32 %v591, %v598
    %v610 = vadd.s32 %v592, %v598
    %v611 = vadd.s32 %v593, %v598
    %v612 = vadd.s32 %v594, %v598
    %v613 = vadd.s32 %v595, %v598
    %v614 = vadd.s32 %v596, %v598
    %vm615 = vcmp.lt.s32.totalorder %v599, 128
    %vm616 = vcmp.lt.s32.totalorder %v600, 128
    %vm617 = vcmp.lt.s32.totalorder %v601, 128
    %vm618 = vcmp.lt.s32.totalorder %v602, 128
    %vm619 = vcmp.lt.s32.totalorder %v603, 128
    %vm620 = vcmp.lt.s32.totalorder %v604, 128
    %vm621 = vcmp.lt.s32.totalorder %v605, 128
    %vm622 = vcmp.lt.s32.totalorder %v606, 128
    %vm623 = vcmp.lt.s32.totalorder %v607, 128
    %vm624 = vcmp.lt.s32.totalorder %v608, 128
    %vm625 = vcmp.lt.s32.totalorder %v609, 128
    %vm626 = vcmp.lt.s32.totalorder %v610, 128
    %vm627 = vcmp.lt.s32.totalorder %v611, 128
    %vm628 = vcmp.lt.s32.totalorder %v612, 128
    %vm629 = vcmp.lt.s32.totalorder %v613, 128
    %vm630 = vcmp.lt.s32.totalorder %v614, 128
    %v631 = vsel %vm615, 1, 0
    %v632 = vsel %vm616, 1, 0
    %v633 = vsel %vm617, 1, 0
    %v634 = vsel %vm618, 1, 0
    %v635 = vsel %vm619, 1, 0
    %v636 = vsel %vm620, 1, 0
    %v637 = vsel %vm621, 1, 0
    %v638 = vsel %vm622, 1, 0
    %v639 = vsel %vm623, 1, 0
    %v640 = vsel %vm624, 1, 0
    %v641 = vsel %vm625, 1, 0
    %v642 = vsel %vm626, 1, 0
    %v643 = vsel %vm627, 1, 0
    %v644 = vsel %vm628, 1, 0
    %v645 = vsel %vm629, 1, 0
    %v646 = vsel %vm630, 1, 0
    %v647 = vcvt.s32.f32 %v631
    %v648 = vcvt.s32.f32 %v632
    %v649 = vcvt.s32.f32 %v633
    %v650 = vcvt.s32.f32 %v634
    %v651 = vcvt.s32.f32 %v635
    %v652 = vcvt.s32.f32 %v636
    %v653 = vcvt.s32.f32 %v637
    %v654 = vcvt.s32.f32 %v638
    %v655 = vcvt.s32.f32 %v639
    %v656 = vcvt.s32.f32 %v640
    %v657 = vcvt.s32.f32 %v641
    %v658 = vcvt.s32.f32 %v642
    %v659 = vcvt.s32.f32 %v643
    %v660 = vcvt.s32.f32 %v644
    %v661 = vcvt.s32.f32 %v645
    %v662 = vcvt.s32.f32 %v646
    %v663 = vmul.f32 %v564, %v647
    %v664 = vmul.f32 %v565, %v648
    %v665 = vmul.f32 %v566, %v649
    %v666 = vmul.f32 %v567, %v650
    %v667 = vmul.f32 %v568, %v651
    %v668 = vmul.f32 %v569, %v652
    %v669 = vmul.f32 %v570, %v653
    %v670 = vmul.f32 %v571, %v654
    %v671 = vmul.f32 %v572, %v655
    %v672 = vmul.f32 %v573, %v656
    %v673 = vmul.f32 %v574, %v657
    %v674 = vmul.f32 %v575, %v658
    %v675 = vmul.f32 %v576, %v659
    %v676 = vmul.f32 %v577, %v660
    %v677 = vmul.f32 %v578, %v661
    %v678 = vmul.f32 %v579, %v662
    %v679 = vsub.f32 1.0, %v564
    %v680 = vsub.f32 1.0, %v565
    %v681 = vsub.f32 1.0, %v566
    %v682 = vsub.f32 1.0, %v567
    %v683 = vsub.f32 1.0, %v568
    %v684 = vsub.f32 1.0, %v569
    %v685 = vsub.f32 1.0, %v570
    %v686 = vsub.f32 1.0, %v571
    %v687 = vsub.f32 1.0, %v572
    %v688 = vsub.f32 1.0, %v573
    %v689 = vsub.f32 1.0, %v574
    %v690 = vsub.f32 1.0, %v575
    %v691 = vsub.f32 1.0, %v576
    %v692 = vsub.f32 1.0, %v577
    %v693 = vsub.f32 1.0, %v578
    %v694 = vsub.f32 1.0, %v579
    %v695 = vmul.f32 %v679, %v647
    %v696 = vmul.f32 %v680, %v648
    %v697 = vmul.f32 %v681, %v649
    %v698 = vmul.f32 %v682, %v650
    %v699 = vmul.f32 %v683, %v651
    %v700 = vmul.f32 %v684, %v652
    %v701 = vmul.f32 %v685, %v653
    %v702 = vmul.f32 %v686, %v654
    %v703 = vmul.f32 %v687, %v655
    %v704 = vmul.f32 %v688, %v656
    %v705 = vmul.f32 %v689, %v657
    %v706 = vmul.f32 %v690, %v658
    %v707 = vmul.f32 %v691, %v659
    %v708 = vmul.f32 %v692, %v660
    %v709 = vmul.f32 %v693, %v661
    %v710 = vmul.f32 %v694, %v662
    %v711 = vmul.f32 %v663, %v532
    %v712 = vmul.f32 %v664, %v533
    %v713 = vmul.f32 %v665, %v534
    %v714 = vmul.f32 %v666, %v535
    %v715 = vmul.f32 %v667, %v536
    %v716 = vmul.f32 %v668, %v537
    %v717 = vmul.f32 %v669, %v538
    %v718 = vmul.f32 %v670, %v539
    %v719 = vmul.f32 %v671, %v540
    %v720 = vmul.f32 %v672, %v541
    %v721 = vmul.f32 %v673, %v542
    %v722 = vmul.f32 %v674, %v543
    %v723 = vmul.f32 %v675, %v544
    %v724 = vmul.f32 %v676, %v545
    %v725 = vmul.f32 %v677, %v546
    %v726 = vmul.f32 %v678, %v547
    %vm727 = vcmask 64512
    %v728 = vsel %vm727, %v711, 0.0
    %v729 = vsel %vm727, %v712, 0.0
    %v730 = vadd.f32 %v728, %v729
    %v731 = vsel %vm727, %v713, 0.0
    %v732 = vadd.f32 %v730, %v731
    %v733 = vsel %vm727, %v714, 0.0
    %v734 = vadd.f32 %v732, %v733
    %v735 = vsel %vm727, %v715, 0.0
    %v736 = vadd.f32 %v734, %v735
    %v737 = vsel %vm727, %v716, 0.0
    %v738 = vadd.f32 %v736, %v737
    %v739 = vsel %vm727, %v717, 0.0
    %v740 = vadd.f32 %v738, %v739
    %v741 = vsel %vm727, %v718, 0.0
    %v742 = vadd.f32 %v740, %v741
    %v743 = vsel %vm727, %v719, 0.0
    %v744 = vadd.f32 %v742, %v743
    %v745 = vsel %vm727, %v720, 0.0
    %v746 = vadd.f32 %v744, %v745
    %v747 = vsel %vm727, %v721, 0.0
    %v748 = vadd.f32 %v746, %v747
    %v749 = vsel %vm727, %v722, 0.0
    %v750 = vadd.f32 %v748, %v749
    %v751 = vsel %vm727, %v723, 0.0
    %v752 = vadd.f32 %v750, %v751
    %v753 = vsel %vm727, %v724, 0.0
    %v754 = vadd.f32 %v752, %v753
    %v755 = vsel %vm727, %v725, 0.0
    %v756 = vadd.f32 %v754, %v755
    %v757 = vsel %vm727, %v726, 0.0
    %v758 = vadd.f32 %v756, %v757
    %759 = vadd.xlane.f32.xlu0 %v758
    %v760 = vpop.xlane.xlu0 %759
    %v761 = vrot.slane %v760, 4
    %v762 = vadd.f32 %v760, %v761
    %v763 = vrot.slane %v762, 2
    %v764 = vadd.f32 %v762, %v763
    %v765 = vrot.slane %v764, 1
    %v766 = vadd.f32 %v764, %v765
    %s767 = vtos %v766
    %v768 = vmul.f32 %v695, %v548
    %v769 = vmul.f32 %v696, %v549
    %v770 = vmul.f32 %v697, %v550
    %v771 = vmul.f32 %v698, %v551
    %v772 = vmul.f32 %v699, %v552
    %v773 = vmul.f32 %v700, %v553
    %v774 = vmul.f32 %v701, %v554
    %v775 = vmul.f32 %v702, %v555
    %v776 = vmul.f32 %v703, %v556
    %v777 = vmul.f32 %v704, %v557
    %v778 = vmul.f32 %v705, %v558
    %v779 = vmul.f32 %v706, %v559
    %v780 = vmul.f32 %v707, %v560
    %v781 = vmul.f32 %v708, %v561
    %v782 = vmul.f32 %v709, %v562
    %v783 = vmul.f32 %v710, %v563
    %v784 = vsel %vm727, %v768, 0.0
    %v785 = vsel %vm727, %v769, 0.0
    %v786 = vadd.f32 %v784, %v785
    %v787 = vsel %vm727, %v770, 0.0
    %v788 = vadd.f32 %v786, %v787
    %v789 = vsel %vm727, %v771, 0.0
    %v790 = vadd.f32 %v788, %v789
    %v791 = vsel %vm727, %v772, 0.0
    %v792 = vadd.f32 %v790, %v791
    %v793 = vsel %vm727, %v773, 0.0
    %v794 = vadd.f32 %v792, %v793
    %v795 = vsel %vm727, %v774, 0.0
    %v796 = vadd.f32 %v794, %v795
    %v797 = vsel %vm727, %v775, 0.0
    %v798 = vadd.f32 %v796, %v797
    %v799 = vsel %vm727, %v776, 0.0
    %v800 = vadd.f32 %v798, %v799
    %v801 = vsel %vm727, %v777, 0.0
    %v802 = vadd.f32 %v800, %v801
    %v803 = vsel %vm727, %v778, 0.0
    %v804 = vadd.f32 %v802, %v803
    %v805 = vsel %vm727, %v779, 0.0
    %v806 = vadd.f32 %v804, %v805
    %v807 = vsel %vm727, %v780, 0.0
    %v808 = vadd.f32 %v806, %v807
    %v809 = vsel %vm727, %v781, 0.0
    %v810 = vadd.f32 %v808, %v809
    %v811 = vsel %vm727, %v782, 0.0
    %v812 = vadd.f32 %v810, %v811
    %v813 = vsel %vm727, %v783, 0.0
    %v814 = vadd.f32 %v812, %v813
    %815 = vadd.xlane.f32.xlu0 %v814
    %v816 = vpop.xlane.xlu0 %815
    %v817 = vrot.slane %v816, 4
    %v818 = vadd.f32 %v816, %v817
    %v819 = vrot.slane %v818, 2
    %v820 = vadd.f32 %v818, %v819
    %v821 = vrot.slane %v820, 1
    %v822 = vadd.f32 %v820, %v821
    %s823 = vtos %v822
    %v824 = vsel %vm727, %v663, 0.0
    %v825 = vsel %vm727, %v664, 0.0
    %v826 = vadd.f32 %v824, %v825
    %v827 = vsel %vm727, %v665, 0.0
    %v828 = vadd.f32 %v826, %v827
    %v829 = vsel %vm727, %v666, 0.0
    %v830 = vadd.f32 %v828, %v829
    %v831 = vsel %vm727, %v667, 0.0
    %v832 = vadd.f32 %v830, %v831
    %v833 = vsel %vm727, %v668, 0.0
    %v834 = vadd.f32 %v832, %v833
    %v835 = vsel %vm727, %v669, 0.0
    %v836 = vadd.f32 %v834, %v835
    %v837 = vsel %vm727, %v670, 0.0
    %v838 = vadd.f32 %v836, %v837
    %v839 = vsel %vm727, %v671, 0.0
    %v840 = vadd.f32 %v838, %v839
    %v841 = vsel %vm727, %v672, 0.0
    %v842 = vadd.f32 %v840, %v841
    %v843 = vsel %vm727, %v673, 0.0
    %v844 = vadd.f32 %v842, %v843
    %v845 = vsel %vm727, %v674, 0.0
    %v846 = vadd.f32 %v844, %v845
    %v847 = vsel %vm727, %v675, 0.0
    %v848 = vadd.f32 %v846, %v847
    %v849 = vsel %vm727, %v676, 0.0
    %v850 = vadd.f32 %v848, %v849
    %v851 = vsel %vm727, %v677, 0.0
    %v852 = vadd.f32 %v850, %v851
    %v853 = vsel %vm727, %v678, 0.0
    %v854 = vadd.f32 %v852, %v853
    %855 = vadd.xlane.f32.xlu0 %v854
    %v856 = vpop.xlane.xlu0 %855
    %v857 = vrot.slane %v856, 4
    %v858 = vadd.f32 %v856, %v857
    %v859 = vrot.slane %v858, 2
    %v860 = vadd.f32 %v858, %v859
    %v861 = vrot.slane %v860, 1
    %v862 = vadd.f32 %v860, %v861
    %s863 = vtos %v862
    %v864 = vlaneseq
    %v865 = vand.u32 %v864, 127
    %vm866 = vcmp.eq.s32.totalorder %v865, 0
    %vm867 = vcmp.eq.s32.totalorder %v865, 1
    %vm868 = vcmp.eq.s32.totalorder %v865, 2
    %v869 = vstv %s863
    %v870 = vsel %vm868, %v869, 0.0
    %v871 = vstv %s823
    %v872 = vsel %vm867, %v871, %v870
    %v873 = vstv %s767
    %v874 = vsel %vm866, %v873, %v872
    %v875 = vld [vmem:[#allocation2] sm:$0xff]
    %v876 = vadd.f32 %v875, %v874
    %877 = vst [vmem:[#allocation2] sm:$0xff] %v876
    // Predicated region
    $region22: #{tpu_custom_call.1} parent=1 // pred_check
      _
    $region23: #{tpu_custom_call.1} parent=1 // pred_check_branch
      %879 = sbr.rel (0) target = $region25
    $region24: #{tpu_custom_call.1} parent=1 // pred_region
      %s881 = ssub.s32 128, 128
      %882 = vsyncadd [#allocation3], %s881
      %s884 = sshll.u32 [#allocation2], 4
      %s885 = int_to_ptr.vmem [resolvable:$true] %s884
      %887 = dma.vmem_to_hbm [thread:$0]  %s885, 128, %s4, [#allocation3]
    $region25: #{tpu_custom_call.1} parent=1 // pred_fallthru
      _
    // Predicated region
    $region26: #{tpu_custom_call.1} parent=1 // pred_check
      _
    $region27: #{tpu_custom_call.1} parent=1 // pred_check_branch
      %889 = sbr.rel (0) target = $region29
    $region28: #{tpu_custom_call.1} parent=1 // pred_region
      %890 = dma.done [#allocation3], 128
    $region29: #{tpu_custom_call.1} parent=1 // pred_fallthru
      _
    %891 = vsyncpa [#allocation3], 1

</llo_original>
